<compile_context>
chip_gen: v7x
topology: tpu7x:2x2x1
jax: 0.10.0
libtpu: 0.0.40
codegen_flags: <defaults>
</compile_context>

<pallas_src>
import math

import jax
import jax.numpy as jnp
from jax.experimental import pallas as pl
from jax.experimental.pallas import tpu as pltpu


def _round_up(x, m):
    return (x + m - 1) // m * m


def _parallel_linear_kernel(x_ref, w_ref, b_ref, o_ref):
    # x_ref: (TL, TB, I)  w_ref: (TL, I, TJ)  b_ref: (TL, 1, TJ)  o_ref: (TL, TB, TJ)
    if x_ref.shape[0] == 1:
        # One linear per step: plain (M,K)x(K,N) MXU matmul, f32 accumulation.
        acc = jnp.dot(x_ref[0], w_ref[0], preferred_element_type=jnp.float32)
        o_ref[0] = (acc + b_ref[0]).astype(o_ref.dtype)
    else:
        # Several small linears per step (tiny-per-linear regime): batched matmul.
        acc = jnp.einsum("lbi,lij->lbj", x_ref[...], w_ref[...],
                         preferred_element_type=jnp.float32)
        o_ref[...] = (acc + b_ref[...]).astype(o_ref.dtype)


def parallel_linear(x, weight, bias=None, *, vmem_budget_bytes=24 * 1024 * 1024):
    """x: (B, L, I), weight: (L, J, I), bias: (L, J) or None -> (B, L, J)."""
    B, L, I = x.shape
    Lw, J, Iw = weight.shape
    assert L == Lw and I == Iw, (x.shape, weight.shape)

    dtypes = [x.dtype, weight.dtype] + ([bias.dtype] if bias is not None else [])
    out_dtype = jnp.result_type(*dtypes)

    # ---------------- tile selection ----------------
    J_pad = _round_up(J, 128)                         # lane-dense output stores
    TJ = next(t for t in (512, 256, 128) if J_pad % t == 0)
    TB = 128 if B >= 128 else _round_up(B, 8)         # MXU / sublane friendly M tile

    def blk_bytes(tl, tb, tj):
        # double-buffered blocks, f32 upper bound
        return 2 * 4 * tl * (tb * I + I * tj + tj + tb * tj)

    # Shrink tiles until the double-buffered working set fits the VMEM budget
    # (budget chosen for v7x's 64 MiB VMEM; ample headroom on v5e/v6e).
    while blk_bytes(1, TB, TJ) > vmem_budget_bytes and TJ > 128:
        TJ //= 2
    while blk_bytes(1, TB, TJ) > vmem_budget_bytes and TB > 8:
        TB = max(8, _round_up(TB // 2, 8))
    # TODO(synk): for very large in_features (I) add a K grid axis with an f32
    # VMEM accumulator (pl.when init/finalize) instead of keeping I whole.

    B_pad = _round_up(B, TB)
    nB = B_pad // TB
    nJ = J_pad // TJ

    # Tiny-per-linear regime: batch several linears per grid step to amortize
    # per-step overhead and enlarge DMA tiles.
    TL = 1
    if nB == 1 and nJ == 1:
        for cand in range(min(L, 16), 1, -1):
            if L % cand == 0 and blk_bytes(cand, TB, TJ) <= vmem_budget_bytes:
                TL = cand
                break
    nL = L // TL

    # ---------------- operand layout (once, outside the kernel) ----------------
    x_lbi = jnp.transpose(x, (1, 0, 2))               # (L, B, I)
    if B_pad != B:
        x_lbi = jnp.pad(x_lbi, ((0, 0), (0, B_pad - B), (0, 0)))

    w_lij = jnp.transpose(weight, (0, 2, 1))          # (L, I, J): canonical MXU feed
    if J_pad != J:
        w_lij = jnp.pad(w_lij, ((0, 0), (0, 0), (0, J_pad - J)))

    if bias is None:
        b_l1j = jnp.zeros((L, 1, J_pad), dtype=out_dtype)
    else:
        b_l1j = bias.reshape(L, 1, J)
        if J_pad != J:
            b_l1j = jnp.pad(b_l1j, ((0, 0), (0, 0), (0, J_pad - J)))

    grid = (nL, nJ, nB)   # B innermost -> weight/bias tiles resident across B tiles

    out_lbj = pl.pallas_call(
        _parallel_linear_kernel,
        out_shape=jax.ShapeDtypeStruct((L, B_pad, J_pad), out_dtype),
        grid_spec=pltpu.PrefetchScalarGridSpec(
            num_scalar_prefetch=0,
            grid=grid,
            in_specs=[
                pl.BlockSpec((TL, TB, I), lambda l, j, b: (l, b, 0)),   # activations
                pl.BlockSpec((TL, I, TJ), lambda l, j, b: (l, 0, j)),   # weights (b-invariant)
                pl.BlockSpec((TL, 1, TJ), lambda l, j, b: (l, 0, j)),   # bias    (b-invariant)
            ],
            out_specs=pl.BlockSpec((TL, TB, TJ), lambda l, j, b: (l, b, j)),
        ),
        compiler_params=pltpu.CompilerParams(
            dimension_semantics=("parallel", "parallel", "parallel"),
            vmem_limit_bytes=48 * 1024 * 1024,
        ),
    )(x_lbi, w_lij, b_l1j)

    # Un-pad and restore (B, L, J); XLA fuses slice + transpose into one copy.
    return jnp.transpose(out_lbj[:, :B, :J], (1, 0, 2))


def init_params(key, num_linears, out_features, in_features):
    """Deterministic init matching reset_parameters():
    kaiming_uniform_(a=sqrt(5)) == U(-1/sqrt(fan_in), 1/sqrt(fan_in)) for weight,
    bias ~ U(-1/sqrt(fan_in), 1/sqrt(fan_in))."""
    kw, kb = jax.random.split(key)
    bound = 1.0 / math.sqrt(in_features)
    weight = jax.random.uniform(
        kw, (num_linears, out_features, in_features),
        minval=-bound, maxval=bound, dtype=jnp.float32)
    bias = jax.random.uniform(
        kb, (num_linears, out_features),
        minval=-bound, maxval=bound, dtype=jnp.float32)
    return weight, bias


if __name__ == "__main__":
    key = jax.random.PRNGKey(0)

    # Small shapes implied by the module: batch=2, num_linears=4,
    # in_features=32, out_features=16.
    B, L, I, J = 2, 4, 32, 16
    kx, kp, k2 = jax.random.split(key, 3)
    x = jax.random.normal(kx, (B, L, I), dtype=jnp.float32)
    weight, bias = init_params(kp, L, J, I)

    out = jax.block_until_ready(parallel_linear(x, weight, bias))
    ref = jnp.einsum("bli,lji->blj", x, weight) + bias
    assert out.shape == (B, L, J)
    assert jnp.allclose(out, ref, atol=1e-5, rtol=1e-5)

    # Second check exercising the tiled path (multiple B tiles, padded J).
    B2, L2, I2, J2 = 256, 3, 160, 200
    kx2, kw2, kb2 = jax.random.split(k2, 3)
    x2 = jax.random.normal(kx2, (B2, L2, I2), dtype=jnp.float32)
    w2 = jax.random.normal(kw2, (L2, J2, I2), dtype=jnp.float32) * 0.05
    b2 = jax.random.normal(kb2, (L2, J2), dtype=jnp.float32)
    out2 = jax.block_until_ready(parallel_linear(x2, w2, b2))
    ref2 = jnp.einsum("bli,lji->blj", x2, w2) + b2
    assert out2.shape == (B2, L2, J2)
    assert jnp.allclose(out2, ref2, atol=1e-4, rtol=1e-4)

    print("KERNEL_OK")
</pallas_src>

<mosaic_0001>
module attributes {stable_mosaic.version = 11 : i64} {
  func.func @_parallel_linear_kernel(%arg0: i32, %arg1: i32, %arg2: i32, %arg3: memref<4x8x32xf32, #tpu.memory_space<vmem>>, %arg4: memref<4x32x128xf32, #tpu.memory_space<vmem>>, %arg5: memref<4x1x128xf32, #tpu.memory_space<vmem>>, %arg6: memref<4x8x128xf32, #tpu.memory_space<vmem>>) attributes {dimension_semantics = [#tpu.dimension_semantics<parallel>, #tpu.dimension_semantics<parallel>, #tpu.dimension_semantics<parallel>], iteration_bounds = array<i64: 1, 1, 1>, scalar_prefetch = 0 : i64, scratch_operands = 0 : i64, tpu.core_type = #tpu.core_type<tc>, window_params = [{transform_indices = @transform_0, window_bounds = array<i64: 4, 8, 32>}, {transform_indices = @transform_1, window_bounds = array<i64: 4, 32, 128>}, {transform_indices = @transform_2, window_bounds = array<i64: 4, 1, 128>}, {transform_indices = @transform_3, window_bounds = array<i64: 4, 8, 128>}]} {
    %c0 = arith.constant 0 : index
    %c0_0 = arith.constant 0 : index
    %c0_1 = arith.constant 0 : index
    %0 = vector.load %arg3[%c0, %c0_0, %c0_1] : memref<4x8x32xf32, #tpu.memory_space<vmem>>, vector<4x8x32xf32>
    %c0_2 = arith.constant 0 : index
    %c0_3 = arith.constant 0 : index
    %c0_4 = arith.constant 0 : index
    %1 = vector.load %arg4[%c0_2, %c0_3, %c0_4] : memref<4x32x128xf32, #tpu.memory_space<vmem>>, vector<4x32x128xf32>
    "tpu.trace_start"() <{level = 10 : i32, message = "lbi,lij->lbj"}> : () -> ()
    %cst = arith.constant dense<0.000000e+00> : vector<4x8x128xf32>
    %2 = tpu.matmul %0, %1, %cst {dimension_numbers = #tpu.dot_dimension_numbers<[2], [1], [1], [2], [0, 0, 0, 1, 1, 2], [0], [0]>} : vector<4x8x32xf32>, vector<4x32x128xf32>, vector<4x8x128xf32> -> vector<4x8x128xf32>
    "tpu.trace_stop"() : () -> ()
    %c0_5 = arith.constant 0 : index
    %c0_6 = arith.constant 0 : index
    %c0_7 = arith.constant 0 : index
    %3 = vector.load %arg5[%c0_5, %c0_6, %c0_7] : memref<4x1x128xf32, #tpu.memory_space<vmem>>, vector<4x1x128xf32>
    %4 = vector.broadcast %3 : vector<4x1x128xf32> to vector<4x8x128xf32>
    %5 = arith.addf %2, %4 : vector<4x8x128xf32>
    %c0_8 = arith.constant 0 : index
    %c0_9 = arith.constant 0 : index
    %c0_10 = arith.constant 0 : index
    %6 = vector.load %arg6[%c0_8, %c0_9, %c0_10] : memref<4x8x128xf32, #tpu.memory_space<vmem>>, vector<4x8x128xf32>
    tpu.vector_store %arg6[%c0_8, %c0_9, %c0_10], %5 {strides = array<i32>} : memref<4x8x128xf32, #tpu.memory_space<vmem>>, vector<4x8x128xf32>,
    return
  }
  func.func @transform_0(%arg0: i32, %arg1: i32, %arg2: i32) -> (i32, i32, i32) {
    %c0_i32 = arith.constant 0 : i32
    %c0_i32_0 = arith.constant 0 : i32
    return %arg0, %arg2, %c0_i32 : i32, i32, i32
  }
  func.func @transform_1(%arg0: i32, %arg1: i32, %arg2: i32) -> (i32, i32, i32) {
    %c0_i32 = arith.constant 0 : i32
    %c0_i32_0 = arith.constant 0 : i32
    return %arg0, %c0_i32, %arg1 : i32, i32, i32
  }
  func.func @transform_2(%arg0: i32, %arg1: i32, %arg2: i32) -> (i32, i32, i32) {
    %c0_i32 = arith.constant 0 : i32
    %c0_i32_0 = arith.constant 0 : i32
    return %arg0, %c0_i32, %arg1 : i32, i32, i32
  }
  func.func @transform_3(%arg0: i32, %arg1: i32, %arg2: i32) -> (i32, i32, i32) {
    %c0_i32 = arith.constant 0 : i32
    return %arg0, %arg2, %arg1 : i32, i32, i32
  }
}

</mosaic_0001>

<llo_original>
// kernel: tpu_custom_call.1
$region0: #{tpu_custom_call.1}
  #allocation0 [shape = 'u32[]', space=smem, size = 0x4, offset = 0x4, fixed_abs, tag = 'smem constant byte address 0x4 - core index']
  #allocation1 [shape = 'u32[144,128]{1,0:T(1,128)}', space=vmem, size = 0x12000, scoped, tag = 'internal scratch']
  %s0 = inlined_call_operand.hbm [shape: f32[4,8,32], index: 0, kind: input, shape index: {}]
  %s1 = inlined_call_operand.hbm [shape: f32[4,32,128], index: 1, kind: input, shape index: {}]
  %s2 = inlined_call_operand.vmem [shape: f32[4,1,128], index: 2, kind: input, shape index: {}]
  %s3 = inlined_call_operand.hbm [shape: f32[4,8,128], index: 3, kind: output, shape index: {}]
  %s4 = sld [smem:[#allocation0]]
  $region30: #{tpu_custom_call.1} parent=0
    _
  %s6 = ssub.s32 1, %s4
  %s7 = scalar_select 0, %s6, %s4
  $region1: #{tpu_custom_call.1} parent=0
    #allocation2 [shape = 'u8[16384]{0}', space=vmem, size = 0x4000, scoped, tag = 'input window, operand 0, single buffered']
    #allocation3 [shape = 's32[1]{0}', space=sflag, size = 0x4, scoped, tag = 'scoped memory for tpu_custom_call.1']
    #allocation4 [shape = 's32[1]{0}', space=sflag, size = 0x4, scoped, tag = 'scoped memory for tpu_custom_call.1']
    #allocation5 [shape = 'u8[65536]{0}', space=vmem, size = 0x10000, scoped, tag = 'input window, operand 1, single buffered']
    #allocation6 [shape = 's32[1]{0}', space=sflag, size = 0x4, scoped, tag = 'scoped memory for tpu_custom_call.1']
    #allocation7 [shape = 'u8[16384]{0}', space=vmem, size = 0x4000, scoped, tag = 'output window, operand 0, single buffered']
    %8 = vsyncpa [#allocation3], 0
    %9 = vsyncpa [#allocation6], 0
    %10 = vsyncpa [#allocation4], 0
    // Predicated region
    $region2: #{tpu_custom_call.1} parent=1 // pred_check
      _
    $region3: #{tpu_custom_call.1} parent=1 // pred_check_branch
      %12 = sbr.rel (0) target = $region5
    $region4: #{tpu_custom_call.1} parent=1 // pred_region
      %s14 = ssub.s32 512, 512
      %15 = vsyncadd [#allocation3], %s14
      %s16 = sshll.u32 [#allocation2], 4
      %s17 = int_to_ptr.vmem [resolvable:$true] %s16
      %22 = dma.hbm_to_vmem [thread:$0]  %s0, 512, %s17, [#allocation3], 128, 128, 8
    $region5: #{tpu_custom_call.1} parent=1 // pred_fallthru
      _
    // Predicated region
    $region6: #{tpu_custom_call.1} parent=1 // pred_check
      _
    $region7: #{tpu_custom_call.1} parent=1 // pred_check_branch
      %24 = sbr.rel (0) target = $region9
    $region8: #{tpu_custom_call.1} parent=1 // pred_region
      %s26 = ssub.s32 2048, 2048
      %27 = vsyncadd [#allocation6], %s26
      %s28 = sshll.u32 [#allocation5], 4
      %s29 = int_to_ptr.vmem [resolvable:$true] %s28
      %34 = dma.hbm_to_vmem [thread:$0]  %s1, 2048, %s29, [#allocation6], 128, 128, 8
    $region9: #{tpu_custom_call.1} parent=1 // pred_fallthru
      _
    // Predicated region
    $region10: #{tpu_custom_call.1} parent=1 // pred_check
      _
    $region11: #{tpu_custom_call.1} parent=1 // pred_check_branch
      %36 = sbr.rel (0) target = $region13
    $region12: #{tpu_custom_call.1} parent=1 // pred_region
      _
    $region13: #{tpu_custom_call.1} parent=1 // pred_fallthru
      _
    // Predicated region
    $region14: #{tpu_custom_call.1} parent=1 // pred_check
      _
    $region15: #{tpu_custom_call.1} parent=1 // pred_check_branch
      %38 = sbr.rel (0) target = $region17
    $region16: #{tpu_custom_call.1} parent=1 // pred_region
      %39 = dma.done [#allocation3], 512
    $region17: #{tpu_custom_call.1} parent=1 // pred_fallthru
      _
    // Predicated region
    $region18: #{tpu_custom_call.1} parent=1 // pred_check
      _
    $region19: #{tpu_custom_call.1} parent=1 // pred_check_branch
      %41 = sbr.rel (0) target = $region21
    $region20: #{tpu_custom_call.1} parent=1 // pred_region
      %42 = dma.done [#allocation6], 2048
    $region21: #{tpu_custom_call.1} parent=1 // pred_fallthru
      _
    %v43 = vld [vmem:[#allocation2] sm:$0xff]
    %v44 = vld [vmem:[#allocation2 + $0x8] sm:$0xff]
    %v45 = vld [vmem:[#allocation2 + $0x10] sm:$0xff]
    %v46 = vld [vmem:[#allocation2 + $0x18] sm:$0xff]
    %v47 = vld [vmem:[#allocation5] sm:$0xff]
    %v48 = vld [vmem:[#allocation5 + $0x8] sm:$0xff]
    %v49 = vld [vmem:[#allocation5 + $0x10] sm:$0xff]
    %v50 = vld [vmem:[#allocation5 + $0x18] sm:$0xff]
    %v51 = vld [vmem:[#allocation5 + $0x20] sm:$0xff]
    %v52 = vld [vmem:[#allocation5 + $0x28] sm:$0xff]
    %v53 = vld [vmem:[#allocation5 + $0x30] sm:$0xff]
    %v54 = vld [vmem:[#allocation5 + $0x38] sm:$0xff]
    %v55 = vld [vmem:[#allocation5 + $0x40] sm:$0xff]
    %v56 = vld [vmem:[#allocation5 + $0x48] sm:$0xff]
    %v57 = vld [vmem:[#allocation5 + $0x50] sm:$0xff]
    %v58 = vld [vmem:[#allocation5 + $0x58] sm:$0xff]
    %v59 = vld [vmem:[#allocation5 + $0x60] sm:$0xff]
    %v60 = vld [vmem:[#allocation5 + $0x68] sm:$0xff]
    %v61 = vld [vmem:[#allocation5 + $0x70] sm:$0xff]
    %v62 = vld [vmem:[#allocation5 + $0x78] sm:$0xff]
    %v63 = vld [vmem:[%s2] sm:$0x1]
    %v64 = vld [vmem:[%s2 + $0x1] sm:$0x1]
    %v65 = vld [vmem:[%s2 + $0x2] sm:$0x1]
    %v66 = vld [vmem:[%s2 + $0x3] sm:$0x1]
    %v71 = vlaneseq
    %v72 = vshrl.u32 %v71, 7
    %v73 = vsub.s32 0, %v72
    %v74 = vrot.slane %v63, %v73
    %v75 = vlaneseq
    %v76 = vshrl.u32 %v75, 7
    %v77 = vsub.s32 0, %v76
    %v78 = vrot.slane %v64, %v77
    %v79 = vlaneseq
    %v80 = vshrl.u32 %v79, 7
    %v81 = vsub.s32 0, %v80
    %v82 = vrot.slane %v65, %v81
    %v83 = vlaneseq
    %v84 = vshrl.u32 %v83, 7
    %v85 = vsub.s32 0, %v84
    %v86 = vrot.slane %v66, %v85
    %vm91 = vcmask 261120
    %v93 = vsel %vm91, %v43, 0
    %95 = vmatprep.subr.mxu0 0.0
    %96 = vmatpush1.msra.mxu0 %v47
    %97 = vmatprep.subr.mxu0 0.0
    %98 = vmatpush1.msra.mxu0 %v48
    %99 = vmatprep.subr.mxu0 0.0
    %100 = vmatpush1.msra.mxu0 %v49
    %101 = vmatprep.subr.mxu0 0.0
    %102 = vmatpush1.msra.mxu0 %v50
    %103 = vmatprep.subr.mxu0 0.0
    %104 = vmatpush1.msra.mxu0 0.0
    %105 = vmatprep.subr.mxu0 0.0
    %106 = vmatpush1.msra.mxu0 0.0
    %107 = vmatprep.subr.mxu0 0.0
    %108 = vmatpush1.msra.mxu0 0.0
    %109 = vmatprep.subr.mxu0 0.0
    %110 = vmatpush1.msra.mxu0 0.0
    %111 = vmatprep.subr.mxu0 0.0
    %112 = vmatpush1.msra.mxu0 0.0
    %113 = vmatprep.subr.mxu0 0.0
    %114 = vmatpush1.msra.mxu0 0.0
    %115 = vmatprep.subr.mxu0 0.0
    %116 = vmatpush1.msra.mxu0 0.0
    %117 = vmatprep.subr.mxu0 0.0
    %118 = vmatpush1.msra.mxu0 0.0
    %119 = vmatprep.subr.mxu0 0.0
    %120 = vmatpush1.msra.mxu0 0.0
    %121 = vmatprep.subr.mxu0 0.0
    %122 = vmatpush1.msra.mxu0 0.0
    %123 = vmatprep.subr.mxu0 0.0
    %124 = vmatpush1.msra.mxu0 0.0
    %125 = vmatprep.subr.mxu0 0.0
    %126 = vmatpush1.msra.mxu0 0.0
    %127 = vmatprep.subr.mxu0 0.0
    %128 = vmatpush1.msra.mxu0 0.0
    %129 = vmatprep.subr.mxu0 0.0
    %130 = vmatpush1.msra.mxu0 0.0
    %131 = vmatprep.subr.mxu0 0.0
    %132 = vmatpush1.msra.mxu0 0.0
    %133 = vmatprep.subr.mxu0 0.0
    %134 = vmatpush1.msra.mxu0 0.0
    %135 = vmatprep.subr.mxu0 0.0
    %136 = vmatpush1.msra.mxu0 0.0
    %137 = vmatprep.subr.mxu0 0.0
    %138 = vmatpush1.msra.mxu0 0.0
    %139 = vmatprep.subr.mxu0 0.0
    %140 = vmatpush1.msra.mxu0 0.0
    %141 = vmatprep.subr.mxu0 0.0
    %142 = vmatpush1.msra.mxu0 0.0
    %143 = vmatprep.subr.mxu0 0.0
    %144 = vmatpush1.msra.mxu0 0.0
    %145 = vmatprep.subr.mxu0 0.0
    %146 = vmatpush1.msra.mxu0 0.0
    %147 = vmatprep.subr.mxu0 0.0
    %148 = vmatpush1.msra.mxu0 0.0
    %149 = vmatprep.subr.mxu0 0.0
    %150 = vmatpush1.msra.mxu0 0.0
    %151 = vmatprep.subr.mxu0 0.0
    %152 = vmatpush1.msra.mxu0 0.0
    %153 = vmatprep.subr.mxu0 0.0
    %154 = vmatpush1.msra.mxu0 0.0
    %155 = vmatprep.subr.mxu0 0.0
    %156 = vmatpush1.msra.mxu0 0.0
    %157 = vmatprep.subr.mxu0 0.0
    %158 = vmatpush1.msra.mxu0 0.0
    %159 = vmatprep.mubr.f32.mxu0 0.0
    %160 = vmatmul.mubr.f32.gmra.mrb[0].mxu0 %v93
    %v161 = vpop.f32.mrb[0].mxu0
    %v162 = vadd.f32 %v74, %v161
    %v163 = vpop.f32.mrb[0].mxu0
    %164 = vdwg.mxu0
    %v166 = vsel %vm91, %v44, 0
    %168 = vmatprep.subr.mxu0 0.0
    %169 = vmatpush1.msra.mxu0 %v51
    %170 = vmatprep.subr.mxu0 0.0
    %171 = vmatpush1.msra.mxu0 %v52
    %172 = vmatprep.subr.mxu0 0.0
    %173 = vmatpush1.msra.mxu0 %v53
    %174 = vmatprep.subr.mxu0 0.0
    %175 = vmatpush1.msra.mxu0 %v54
    %176 = vmatprep.subr.mxu0 0.0
    %177 = vmatpush1.msra.mxu0 0.0
    %178 = vmatprep.subr.mxu0 0.0
    %179 = vmatpush1.msra.mxu0 0.0
    %180 = vmatprep.subr.mxu0 0.0
    %181 = vmatpush1.msra.mxu0 0.0
    %182 = vmatprep.subr.mxu0 0.0
    %183 = vmatpush1.msra.mxu0 0.0
    %184 = vmatprep.subr.mxu0 0.0
    %185 = vmatpush1.msra.mxu0 0.0
    %186 = vmatprep.subr.mxu0 0.0
    %187 = vmatpush1.msra.mxu0 0.0
    %188 = vmatprep.subr.mxu0 0.0
    %189 = vmatpush1.msra.mxu0 0.0
    %190 = vmatprep.subr.mxu0 0.0
    %191 = vmatpush1.msra.mxu0 0.0
    %192 = vmatprep.subr.mxu0 0.0
    %193 = vmatpush1.msra.mxu0 0.0
    %194 = vmatprep.subr.mxu0 0.0
    %195 = vmatpush1.msra.mxu0 0.0
    %196 = vmatprep.subr.mxu0 0.0
    %197 = vmatpush1.msra.mxu0 0.0
    %198 = vmatprep.subr.mxu0 0.0
    %199 = vmatpush1.msra.mxu0 0.0
    %200 = vmatprep.subr.mxu0 0.0
    %201 = vmatpush1.msra.mxu0 0.0
    %202 = vmatprep.subr.mxu0 0.0
    %203 = vmatpush1.msra.mxu0 0.0
    %204 = vmatprep.subr.mxu0 0.0
    %205 = vmatpush1.msra.mxu0 0.0
    %206 = vmatprep.subr.mxu0 0.0
    %207 = vmatpush1.msra.mxu0 0.0
    %208 = vmatprep.subr.mxu0 0.0
    %209 = vmatpush1.msra.mxu0 0.0
    %210 = vmatprep.subr.mxu0 0.0
    %211 = vmatpush1.msra.mxu0 0.0
    %212 = vmatprep.subr.mxu0 0.0
    %213 = vmatpush1.msra.mxu0 0.0
    %214 = vmatprep.subr.mxu0 0.0
    %215 = vmatpush1.msra.mxu0 0.0
    %216 = vmatprep.subr.mxu0 0.0
    %217 = vmatpush1.msra.mxu0 0.0
    %218 = vmatprep.subr.mxu0 0.0
    %219 = vmatpush1.msra.mxu0 0.0
    %220 = vmatprep.subr.mxu0 0.0
    %221 = vmatpush1.msra.mxu0 0.0
    %222 = vmatprep.subr.mxu0 0.0
    %223 = vmatpush1.msra.mxu0 0.0
    %224 = vmatprep.subr.mxu0 0.0
    %225 = vmatpush1.msra.mxu0 0.0
    %226 = vmatprep.subr.mxu0 0.0
    %227 = vmatpush1.msra.mxu0 0.0
    %228 = vmatprep.subr.mxu0 0.0
    %229 = vmatpush1.msra.mxu0 0.0
    %230 = vmatprep.subr.mxu0 0.0
    %231 = vmatpush1.msra.mxu0 0.0
    %232 = vmatprep.mubr.f32.mxu0 0.0
    %233 = vmatmul.mubr.f32.gmra.mrb[0].mxu0 %v166
    %v234 = vpop.f32.mrb[0].mxu0
    %v235 = vadd.f32 %v78, %v234
    %v236 = vpop.f32.mrb[0].mxu0
    %237 = vdwg.mxu0
    %v239 = vsel %vm91, %v45, 0
    %241 = vmatprep.subr.mxu0 0.0
    %242 = vmatpush1.msra.mxu0 %v55
    %243 = vmatprep.subr.mxu0 0.0
    %244 = vmatpush1.msra.mxu0 %v56
    %245 = vmatprep.subr.mxu0 0.0
    %246 = vmatpush1.msra.mxu0 %v57
    %247 = vmatprep.subr.mxu0 0.0
    %248 = vmatpush1.msra.mxu0 %v58
    %249 = vmatprep.subr.mxu0 0.0
    %250 = vmatpush1.msra.mxu0 0.0
    %251 = vmatprep.subr.mxu0 0.0
    %252 = vmatpush1.msra.mxu0 0.0
    %253 = vmatprep.subr.mxu0 0.0
    %254 = vmatpush1.msra.mxu0 0.0
    %255 = vmatprep.subr.mxu0 0.0
    %256 = vmatpush1.msra.mxu0 0.0
    %257 = vmatprep.subr.mxu0 0.0
    %258 = vmatpush1.msra.mxu0 0.0
    %259 = vmatprep.subr.mxu0 0.0
    %260 = vmatpush1.msra.mxu0 0.0
    %261 = vmatprep.subr.mxu0 0.0
    %262 = vmatpush1.msra.mxu0 0.0
    %263 = vmatprep.subr.mxu0 0.0
    %264 = vmatpush1.msra.mxu0 0.0
    %265 = vmatprep.subr.mxu0 0.0
    %266 = vmatpush1.msra.mxu0 0.0
    %267 = vmatprep.subr.mxu0 0.0
    %268 = vmatpush1.msra.mxu0 0.0
    %269 = vmatprep.subr.mxu0 0.0
    %270 = vmatpush1.msra.mxu0 0.0
    %271 = vmatprep.subr.mxu0 0.0
    %272 = vmatpush1.msra.mxu0 0.0
    %273 = vmatprep.subr.mxu0 0.0
    %274 = vmatpush1.msra.mxu0 0.0
    %275 = vmatprep.subr.mxu0 0.0
    %276 = vmatpush1.msra.mxu0 0.0
    %277 = vmatprep.subr.mxu0 0.0
    %278 = vmatpush1.msra.mxu0 0.0
    %279 = vmatprep.subr.mxu0 0.0
    %280 = vmatpush1.msra.mxu0 0.0
    %281 = vmatprep.subr.mxu0 0.0
    %282 = vmatpush1.msra.mxu0 0.0
    %283 = vmatprep.subr.mxu0 0.0
    %284 = vmatpush1.msra.mxu0 0.0
    %285 = vmatprep.subr.mxu0 0.0
    %286 = vmatpush1.msra.mxu0 0.0
    %287 = vmatprep.subr.mxu0 0.0
    %288 = vmatpush1.msra.mxu0 0.0
    %289 = vmatprep.subr.mxu0 0.0
    %290 = vmatpush1.msra.mxu0 0.0
    %291 = vmatprep.subr.mxu0 0.0
    %292 = vmatpush1.msra.mxu0 0.0
    %293 = vmatprep.subr.mxu0 0.0
    %294 = vmatpush1.msra.mxu0 0.0
    %295 = vmatprep.subr.mxu0 0.0
    %296 = vmatpush1.msra.mxu0 0.0
    %297 = vmatprep.subr.mxu0 0.0
    %298 = vmatpush1.msra.mxu0 0.0
    %299 = vmatprep.subr.mxu0 0.0
    %300 = vmatpush1.msra.mxu0 0.0
    %301 = vmatprep.subr.mxu0 0.0
    %302 = vmatpush1.msra.mxu0 0.0
    %303 = vmatprep.subr.mxu0 0.0
    %304 = vmatpush1.msra.mxu0 0.0
    %305 = vmatprep.mubr.f32.mxu0 0.0
    %306 = vmatmul.mubr.f32.gmra.mrb[0].mxu0 %v239
    %v307 = vpop.f32.mrb[0].mxu0
    %v308 = vadd.f32 %v82, %v307
    %v309 = vpop.f32.mrb[0].mxu0
    %310 = vdwg.mxu0
    %v312 = vsel %vm91, %v46, 0
    %314 = vmatprep.subr.mxu0 0.0
    %315 = vmatpush1.msra.mxu0 %v59
    %316 = vmatprep.subr.mxu0 0.0
    %317 = vmatpush1.msra.mxu0 %v60
    %318 = vmatprep.subr.mxu0 0.0
    %319 = vmatpush1.msra.mxu0 %v61
    %320 = vmatprep.subr.mxu0 0.0
    %321 = vmatpush1.msra.mxu0 %v62
    %322 = vmatprep.subr.mxu0 0.0
    %323 = vmatpush1.msra.mxu0 0.0
    %324 = vmatprep.subr.mxu0 0.0
    %325 = vmatpush1.msra.mxu0 0.0
    %326 = vmatprep.subr.mxu0 0.0
    %327 = vmatpush1.msra.mxu0 0.0
    %328 = vmatprep.subr.mxu0 0.0
    %329 = vmatpush1.msra.mxu0 0.0
    %330 = vmatprep.subr.mxu0 0.0
    %331 = vmatpush1.msra.mxu0 0.0
    %332 = vmatprep.subr.mxu0 0.0
    %333 = vmatpush1.msra.mxu0 0.0
    %334 = vmatprep.subr.mxu0 0.0
    %335 = vmatpush1.msra.mxu0 0.0
    %336 = vmatprep.subr.mxu0 0.0
    %337 = vmatpush1.msra.mxu0 0.0
    %338 = vmatprep.subr.mxu0 0.0
    %339 = vmatpush1.msra.mxu0 0.0
    %340 = vmatprep.subr.mxu0 0.0
    %341 = vmatpush1.msra.mxu0 0.0
    %342 = vmatprep.subr.mxu0 0.0
    %343 = vmatpush1.msra.mxu0 0.0
    %344 = vmatprep.subr.mxu0 0.0
    %345 = vmatpush1.msra.mxu0 0.0
    %346 = vmatprep.subr.mxu0 0.0
    %347 = vmatpush1.msra.mxu0 0.0
    %348 = vmatprep.subr.mxu0 0.0
    %349 = vmatpush1.msra.mxu0 0.0
    %350 = vmatprep.subr.mxu0 0.0
    %351 = vmatpush1.msra.mxu0 0.0
    %352 = vmatprep.subr.mxu0 0.0
    %353 = vmatpush1.msra.mxu0 0.0
    %354 = vmatprep.subr.mxu0 0.0
    %355 = vmatpush1.msra.mxu0 0.0
    %356 = vmatprep.subr.mxu0 0.0
    %357 = vmatpush1.msra.mxu0 0.0
    %358 = vmatprep.subr.mxu0 0.0
    %359 = vmatpush1.msra.mxu0 0.0
    %360 = vmatprep.subr.mxu0 0.0
    %361 = vmatpush1.msra.mxu0 0.0
    %362 = vmatprep.subr.mxu0 0.0
    %363 = vmatpush1.msra.mxu0 0.0
    %364 = vmatprep.subr.mxu0 0.0
    %365 = vmatpush1.msra.mxu0 0.0
    %366 = vmatprep.subr.mxu0 0.0
    %367 = vmatpush1.msra.mxu0 0.0
    %368 = vmatprep.subr.mxu0 0.0
    %369 = vmatpush1.msra.mxu0 0.0
    %370 = vmatprep.subr.mxu0 0.0
    %371 = vmatpush1.msra.mxu0 0.0
    %372 = vmatprep.subr.mxu0 0.0
    %373 = vmatpush1.msra.mxu0 0.0
    %374 = vmatprep.subr.mxu0 0.0
    %375 = vmatpush1.msra.mxu0 0.0
    %376 = vmatprep.subr.mxu0 0.0
    %377 = vmatpush1.msra.mxu0 0.0
    %378 = vmatprep.mubr.f32.mxu0 0.0
    %379 = vmatmul.mubr.f32.gmra.mrb[0].mxu0 %v312
    %v380 = vpop.f32.mrb[0].mxu0
    %v381 = vadd.f32 %v86, %v380
    %v382 = vpop.f32.mrb[0].mxu0
    %383 = vdwg.mxu0
    %384 = vst [vmem:[#allocation7] sm:$0xff] %v162
    %385 = vst [vmem:[#allocation7 + $0x8] sm:$0xff] %v235
    %386 = vst [vmem:[#allocation7 + $0x10] sm:$0xff] %v308
    %387 = vst [vmem:[#allocation7 + $0x18] sm:$0xff] %v381
    // Predicated region
    $region22: #{tpu_custom_call.1} parent=1 // pred_check
      _
    $region23: #{tpu_custom_call.1} parent=1 // pred_check_branch
      %389 = sbr.rel (0) target = $region25
    $region24: #{tpu_custom_call.1} parent=1 // pred_region
      %s391 = ssub.s32 512, 512
      %392 = vsyncadd [#allocation4], %s391
      %s393 = sshll.u32 [#allocation7], 4
      %s394 = int_to_ptr.vmem [resolvable:$true] %s393
      %399 = dma.vmem_to_hbm [thread:$0]  %s394, 512, %s3, [#allocation4], 128, 128, 8
    $region25: #{tpu_custom_call.1} parent=1 // pred_fallthru
      _
    // Predicated region
    $region26: #{tpu_custom_call.1} parent=1 // pred_check
      _
    $region27: #{tpu_custom_call.1} parent=1 // pred_check_branch
      %401 = sbr.rel (0) target = $region29
    $region28: #{tpu_custom_call.1} parent=1 // pred_region
      %402 = dma.done [#allocation4], 512
    $region29: #{tpu_custom_call.1} parent=1 // pred_fallthru
      _
    %403 = vsyncpa [#allocation3], 1
    %404 = vsyncpa [#allocation6], 1
    %405 = vsyncpa [#allocation4], 1

</llo_original>
